<compile_context>
chip_gen: v7x
topology: tpu7x:2x2x1
jax: 0.10.0
libtpu: 0.0.40
codegen_flags: <defaults>
</compile_context>

<pallas_src>
import functools

import jax
import jax.numpy as jnp
from jax.experimental import pallas as pl
from jax.experimental.pallas import tpu as pltpu

EPS = 1e-5

_MIN_ROW_TILE = 256            # never shrink tiles below this just to add grid steps
_MIN_STEPS = 8                 # target >= 8 steps -> >= 4 per TensorCore on v7x megacore
_MAX_TILE_BYTES = 8 * 1024 * 1024   # soft cap on a single input tile (input dtype)


def _round_up(x, m):
    return ((x + m - 1) // m) * m


def _vmem_budget_and_limit():
    """Pick the pipeline VMEM budget / Mosaic scoped limit per chip generation."""
    vmem_bytes = None
    try:
        info = pltpu.get_tpu_info()
        cap = getattr(info, "vmem_capacity_bytes", None)
        if isinstance(cap, int) and cap > 0:
            vmem_bytes = cap
    except Exception:
        vmem_bytes = None
    if vmem_bytes is None:
        vmem_bytes = 64 * 1024 * 1024          # conservative: assume v7x (64 MiB / TC)
    if vmem_bytes >= 128 * 1024 * 1024:        # v5e / v6e: 128 MiB physical
        return 80 * 1024 * 1024, 100 * 1024 * 1024
    return 40 * 1024 * 1024, 48 * 1024 * 1024  # v7x: 64 MiB physical


def _bytes_per_row(hidden, itemsize):
    # x, y, out tiles double-buffered by the pipeline (6 copies at the input dtype)
    # plus ~3 live f32 temporaries (z, z - mean, squares) inside the kernel body.
    return 6 * hidden * itemsize + 3 * hidden * 4


def _choose_row_tile(rows, hidden, itemsize, sublane, vmem_budget):
    if rows <= sublane:
        # Tiny problem: single full-extent block (exempt from the sublane rule).
        return rows

    bpr = _bytes_per_row(hidden, itemsize)
    budget_rows = max(sublane, vmem_budget // bpr)
    size_rows = max(sublane, _MAX_TILE_BYTES // (hidden * itemsize))
    row_tile = max(sublane, (min(budget_rows, size_rows) // sublane) * sublane)
    # Keep the block row dim <= rows (partial LAST block is fine; a block bigger
    # than the array is not needed).
    row_tile = min(row_tile, max(sublane, (rows // sublane) * sublane))

    # Enough grid steps for DMA/compute overlap and megacore balance, but never
    # shrink tiles below _MIN_ROW_TILE rows (keeps per-step DMAs efficient).
    min_tile = max(sublane, min(row_tile, _MIN_ROW_TILE))
    while pl.cdiv(rows, row_tile) < _MIN_STEPS and row_tile > min_tile:
        row_tile = max(min_tile, _round_up((row_tile + 1) // 2, sublane))

    # Prefer an even step count so v7x's two TensorCores stay balanced.
    steps = pl.cdiv(rows, row_tile)
    if steps > 1 and steps % 2 == 1:
        cand = _round_up(pl.cdiv(rows, steps + 1), sublane)
        if cand >= min_tile and pl.cdiv(rows, cand) % 2 == 0:
            row_tile = cand
    return row_tile


def _addnorm_kernel(x_ref, y_ref, o_ref, *, d):
    # Z = X + dropout(Y) = X + Y   (dropout p == 0 in the reference module).
    z = x_ref[...].astype(jnp.float32) + y_ref[...].astype(jnp.float32)
    mean = jnp.sum(z, axis=-1, keepdims=True) * (1.0 / d)
    zc = z - mean
    # Two-pass (centered) variance: avoids E[z^2]-mean^2 cancellation; extra VPU/XLU
    # work is free in this HBM-bound kernel.  PyTorch var(unbiased=True) -> / (d-1).
    var = jnp.sum(zc * zc, axis=-1, keepdims=True) * (1.0 / (d - 1.0))
    o_ref[...] = (zc * jax.lax.rsqrt(var + EPS)).astype(o_ref.dtype)


def add_norm(x, y):
    assert x.shape == y.shape, (x.shape, y.shape)
    orig_shape = x.shape
    hidden = orig_shape[-1]
    assert hidden > 1, "unbiased variance (d-1) requires hidden > 1"

    rows = 1
    for s in orig_shape[:-1]:
        rows *= s

    # Contiguous flatten -> metadata-only reshape, no HBM pass.
    x2 = x.reshape(rows, hidden)
    y2 = y.reshape(rows, hidden)

    itemsize = jnp.dtype(x.dtype).itemsize
    sublane = {4: 8, 2: 16, 1: 32}.get(itemsize, 8)

    budget, vmem_limit = _vmem_budget_and_limit()
    row_tile = _choose_row_tile(rows, hidden, itemsize, sublane, budget)

    # Make sure the scoped limit covers the actual footprint (degenerate huge-hidden case).
    est_bytes = row_tile * _bytes_per_row(hidden, itemsize)
    vmem_limit = max(vmem_limit, min(est_bytes + (8 << 20), 127 * 1024 * 1024))

    grid = (pl.cdiv(rows, row_tile),)  # partial last block allowed; OOB writes dropped

    out = pl.pallas_call(
        functools.partial(_addnorm_kernel, d=float(hidden)),
        out_shape=jax.ShapeDtypeStruct((rows, hidden), x.dtype),
        grid=grid,
        in_specs=[
            # Last dim = full hidden extent (exempt from the 128-divisibility rule),
            # so no lane padding / HBM copies are ever needed.
            pl.BlockSpec((row_tile, hidden), lambda i: (i, 0)),
            pl.BlockSpec((row_tile, hidden), lambda i: (i, 0)),
        ],
        out_specs=pl.BlockSpec((row_tile, hidden), lambda i: (i, 0)),
        compiler_params=pltpu.CompilerParams(
            dimension_semantics=("parallel",),
            vmem_limit_bytes=vmem_limit,
        ),
    )(x2, y2)

    return out.reshape(orig_shape)


def add_norm_ref(x, y):
    z = x + y
    mean = jnp.mean(z, axis=-1, keepdims=True)
    var = jnp.var(z, axis=-1, keepdims=True, ddof=1)  # unbiased, as in the PyTorch module
    return (z - mean) / jnp.sqrt(var + EPS)


if __name__ == "__main__":
    key = jax.random.PRNGKey(0)
    kx, ky = jax.random.split(key)

    batch, seq, hidden = 2, 8, 32
    x = jax.random.normal(kx, (batch, seq, hidden), dtype=jnp.float32)
    y = jax.random.normal(ky, (batch, seq, hidden), dtype=jnp.float32)

    out = jax.block_until_ready(add_norm(x, y))

    ref = add_norm_ref(x, y)
    assert out.shape == (batch, seq, hidden)
    assert jnp.allclose(out, ref, atol=1e-4, rtol=1e-4), "mismatch vs reference"

    print("KERNEL_OK")
</pallas_src>

<mosaic_0001>
module attributes {stable_mosaic.version = 11 : i64} {
  func.func @_addnorm_kernel(%arg0: i32, %arg1: memref<16x32xf32, #tpu.memory_space<vmem>>, %arg2: memref<16x32xf32, #tpu.memory_space<vmem>>, %arg3: memref<16x32xf32, #tpu.memory_space<vmem>>) attributes {dimension_semantics = [#tpu.dimension_semantics<parallel>], iteration_bounds = array<i64: 1>, scalar_prefetch = 0 : i64, scratch_operands = 0 : i64, tpu.core_type = #tpu.core_type<tc>, window_params = [{transform_indices = @transform_0, window_bounds = array<i64: 16, 32>}, {transform_indices = @transform_1, window_bounds = array<i64: 16, 32>}, {transform_indices = @transform_2, window_bounds = array<i64: 16, 32>}]} {
    %c0 = arith.constant 0 : index
    %c0_0 = arith.constant 0 : index
    %0 = vector.load %arg1[%c0, %c0_0] : memref<16x32xf32, #tpu.memory_space<vmem>>, vector<16x32xf32>
    %c0_1 = arith.constant 0 : index
    %c0_2 = arith.constant 0 : index
    %1 = vector.load %arg2[%c0_1, %c0_2] : memref<16x32xf32, #tpu.memory_space<vmem>>, vector<16x32xf32>
    %2 = arith.addf %0, %1 : vector<16x32xf32>
    %cst = arith.constant dense<0.000000e+00> : vector<16xf32>
    %3 = vector.multi_reduction <add>, %2, %cst [1] : vector<16x32xf32> to vector<16xf32>
    %4 = vector.shape_cast %3 : vector<16xf32> to vector<16x1xf32>
    %cst_3 = arith.constant 3.125000e-02 : f32
    %5 = vector.broadcast %cst_3 : f32 to vector<16x1xf32>
    %6 = arith.mulf %4, %5 : vector<16x1xf32>
    %7 = vector.broadcast %6 : vector<16x1xf32> to vector<16x32xf32>
    %8 = arith.subf %2, %7 : vector<16x32xf32>
    %9 = arith.mulf %8, %8 : vector<16x32xf32>
    %cst_4 = arith.constant dense<0.000000e+00> : vector<16xf32>
    %10 = vector.multi_reduction <add>, %9, %cst_4 [1] : vector<16x32xf32> to vector<16xf32>
    %11 = vector.shape_cast %10 : vector<16xf32> to vector<16x1xf32>
    %cst_5 = arith.constant 0.0322580636 : f32
    %12 = vector.broadcast %cst_5 : f32 to vector<16x1xf32>
    %13 = arith.mulf %11, %12 : vector<16x1xf32>
    %cst_6 = arith.constant 9.99999974E-6 : f32
    %14 = vector.broadcast %cst_6 : f32 to vector<16x1xf32>
    %15 = arith.addf %13, %14 : vector<16x1xf32>
    %16 = math.rsqrt %15 : vector<16x1xf32>
    %17 = vector.broadcast %16 : vector<16x1xf32> to vector<16x32xf32>
    %18 = arith.mulf %8, %17 : vector<16x32xf32>
    %c0_7 = arith.constant 0 : index
    %c0_8 = arith.constant 0 : index
    %19 = vector.load %arg3[%c0_7, %c0_8] : memref<16x32xf32, #tpu.memory_space<vmem>>, vector<16x32xf32>
    tpu.vector_store %arg3[%c0_7, %c0_8], %18 {strides = array<i32>} : memref<16x32xf32, #tpu.memory_space<vmem>>, vector<16x32xf32>,
    return
  }
  func.func @transform_0(%arg0: i32) -> (i32, i32) {
    %c0_i32 = arith.constant 0 : i32
    %c0_i32_0 = arith.constant 0 : i32
    return %arg0, %c0_i32 : i32, i32
  }
  func.func @transform_1(%arg0: i32) -> (i32, i32) {
    %c0_i32 = arith.constant 0 : i32
    %c0_i32_0 = arith.constant 0 : i32
    return %arg0, %c0_i32 : i32, i32
  }
  func.func @transform_2(%arg0: i32) -> (i32, i32) {
    %c0_i32 = arith.constant 0 : i32
    %c0_i32_0 = arith.constant 0 : i32
    return %arg0, %c0_i32 : i32, i32
  }
}

</mosaic_0001>

<llo_original>
// kernel: tpu_custom_call.1
$region0: #{tpu_custom_call.1}
  #allocation0 [shape = 'u32[]', space=smem, size = 0x4, offset = 0x4, fixed_abs, tag = 'smem constant byte address 0x4 - core index']
  #allocation1 [shape = 'u32[144,128]{1,0:T(1,128)}', space=vmem, size = 0x12000, scoped, tag = 'internal scratch']
  %s0 = inlined_call_operand.hbm [shape: f32[16,32], index: 0, kind: input, shape index: {}]
  %s1 = inlined_call_operand.hbm [shape: f32[16,32], index: 1, kind: input, shape index: {}]
  %s2 = inlined_call_operand.hbm [shape: f32[16,32], index: 2, kind: output, shape index: {}]
  %s3 = sld [smem:[#allocation0]]
  $region26: #{tpu_custom_call.1} parent=0
    _
  %s5 = ssub.s32 1, %s3
  %s6 = scalar_select 0, %s5, %s3
  $region1: #{tpu_custom_call.1} parent=0
    #allocation2 [shape = 'u8[8192]{0}', space=vmem, size = 0x2000, scoped, tag = 'input window, operand 0, single buffered']
    #allocation3 [shape = 's32[1]{0}', space=sflag, size = 0x4, scoped, tag = 'scoped memory for tpu_custom_call.1']
    #allocation4 [shape = 's32[1]{0}', space=sflag, size = 0x4, scoped, tag = 'scoped memory for tpu_custom_call.1']
    #allocation5 [shape = 'u8[8192]{0}', space=vmem, size = 0x2000, scoped, tag = 'input window, operand 1, single buffered']
    #allocation6 [shape = 's32[1]{0}', space=sflag, size = 0x4, scoped, tag = 'scoped memory for tpu_custom_call.1']
    #allocation7 [shape = 'u8[8192]{0}', space=vmem, size = 0x2000, scoped, tag = 'output window, operand 0, single buffered']
    %7 = vsyncpa [#allocation3], 0
    %8 = vsyncpa [#allocation6], 0
    %9 = vsyncpa [#allocation4], 0
    // Predicated region
    $region2: #{tpu_custom_call.1} parent=1 // pred_check
      _
    $region3: #{tpu_custom_call.1} parent=1 // pred_check_branch
      %11 = sbr.rel (0) target = $region5
    $region4: #{tpu_custom_call.1} parent=1 // pred_region
      %s13 = ssub.s32 256, 256
      %14 = vsyncadd [#allocation3], %s13
      %s15 = sshll.u32 [#allocation2], 4
      %s16 = int_to_ptr.vmem [resolvable:$true] %s15
      %21 = dma.hbm_to_vmem [thread:$0]  %s0, 256, %s16, [#allocation3], 128, 128, 8
    $region5: #{tpu_custom_call.1} parent=1 // pred_fallthru
      _
    // Predicated region
    $region6: #{tpu_custom_call.1} parent=1 // pred_check
      _
    $region7: #{tpu_custom_call.1} parent=1 // pred_check_branch
      %23 = sbr.rel (0) target = $region9
    $region8: #{tpu_custom_call.1} parent=1 // pred_region
      %s25 = ssub.s32 256, 256
      %26 = vsyncadd [#allocation6], %s25
      %s27 = sshll.u32 [#allocation5], 4
      %s28 = int_to_ptr.vmem [resolvable:$true] %s27
      %33 = dma.hbm_to_vmem [thread:$0]  %s1, 256, %s28, [#allocation6], 128, 128, 8
    $region9: #{tpu_custom_call.1} parent=1 // pred_fallthru
      _
    // Predicated region
    $region10: #{tpu_custom_call.1} parent=1 // pred_check
      _
    $region11: #{tpu_custom_call.1} parent=1 // pred_check_branch
      %35 = sbr.rel (0) target = $region13
    $region12: #{tpu_custom_call.1} parent=1 // pred_region
      %36 = dma.done [#allocation3], 256
    $region13: #{tpu_custom_call.1} parent=1 // pred_fallthru
      _
    // Predicated region
    $region14: #{tpu_custom_call.1} parent=1 // pred_check
      _
    $region15: #{tpu_custom_call.1} parent=1 // pred_check_branch
      %38 = sbr.rel (0) target = $region17
    $region16: #{tpu_custom_call.1} parent=1 // pred_region
      %39 = dma.done [#allocation6], 256
    $region17: #{tpu_custom_call.1} parent=1 // pred_fallthru
      _
    %v40 = vld [vmem:[#allocation2] sm:$0xff]
    %v41 = vld [vmem:[#allocation2 + $0x8] sm:$0xff]
    %v42 = vld [vmem:[#allocation5] sm:$0xff]
    %v43 = vld [vmem:[#allocation5 + $0x8] sm:$0xff]
    %v44 = vadd.f32 %v40, %v42
    %v45 = vadd.f32 %v41, %v43
    %vm46 = vcmask 261120
    %v47 = vsel %vm46, %v44, 0.0
    %48 = vadd.xlane.f32.xlu0 %v47
    %v49 = vpop.xlane.xlu0 %48
    %v50 = vsel %vm46, %v45, 0.0
    %51 = vadd.xlane.f32.xlu0 %v50
    %v52 = vpop.xlane.xlu0 %51
    %v53 = vmul.f32 %v49, 0.03125
    %v54 = vmul.f32 %v52, 0.03125
    %v55 = vsub.f32 %v44, %v53
    %v56 = vsub.f32 %v45, %v54
    %v57 = vmul.f32 %v55, %v55
    %v58 = vmul.f32 %v56, %v56
    %v59 = vsel %vm46, %v57, 0.0
    %60 = vadd.xlane.f32.xlu0 %v59
    %v61 = vpop.xlane.xlu0 %60
    %v62 = vsel %vm46, %v58, 0.0
    %63 = vadd.xlane.f32.xlu0 %v62
    %v64 = vpop.xlane.xlu0 %63
    %v65 = vmul.f32 %v61, 0.032258064
    %v66 = vmul.f32 %v64, 0.032258064
    %v67 = vadd.f32 %v65, 1e-05
    %v68 = vadd.f32 %v66, 1e-05
    %v69 = vrsqrt.pop %v67
    %v70 = vrsqrt.pop %v68
    %v71 = vmul.f32 %v55, %v69
    %v72 = vmul.f32 %v56, %v70
    %73 = vst.msk [vmem:[#allocation7] sm:$0xff] %vm46, %v71
    %74 = vst.msk [vmem:[#allocation7 + $0x8] sm:$0xff] %vm46, %v72
    // Predicated region
    $region18: #{tpu_custom_call.1} parent=1 // pred_check
      _
    $region19: #{tpu_custom_call.1} parent=1 // pred_check_branch
      %76 = sbr.rel (0) target = $region21
    $region20: #{tpu_custom_call.1} parent=1 // pred_region
      %s78 = ssub.s32 256, 256
      %79 = vsyncadd [#allocation4], %s78
      %s80 = sshll.u32 [#allocation7], 4
      %s81 = int_to_ptr.vmem [resolvable:$true] %s80
      %86 = dma.vmem_to_hbm [thread:$0]  %s81, 256, %s2, [#allocation4], 128, 128, 8
    $region21: #{tpu_custom_call.1} parent=1 // pred_fallthru
      _
    // Predicated region
    $region22: #{tpu_custom_call.1} parent=1 // pred_check
      _
    $region23: #{tpu_custom_call.1} parent=1 // pred_check_branch
      %88 = sbr.rel (0) target = $region25
    $region24: #{tpu_custom_call.1} parent=1 // pred_region
      %89 = dma.done [#allocation4], 256
    $region25: #{tpu_custom_call.1} parent=1 // pred_fallthru
      _
    %90 = vsyncpa [#allocation3], 1
    %91 = vsyncpa [#allocation6], 1
    %92 = vsyncpa [#allocation4], 1

</llo_original>
